<compile_context>
chip_gen: v6e
topology: v6e:2x2x1
jax: 0.10.0
libtpu: 0.0.40
codegen_flags: <defaults>
</compile_context>

<pallas_src>
import functools

import jax
import jax.numpy as jnp
import numpy as np
from jax.experimental import pallas as pl
from jax.experimental.pallas import tpu as pltpu


# ----------------------------------------------------------------------------
# Kernel 1: encoder  x = relu(init_embed @ W + b), plus per-row ||x||^2
# ----------------------------------------------------------------------------
def pca_relu_kernel(x_ref, w_ref, b_ref, o_ref, osq_ref):
    y = jnp.dot(x_ref[...].astype(jnp.bfloat16),          # bf16 operands,
                w_ref[...].astype(jnp.bfloat16),          # f32 accumulation (MXU)
                preferred_element_type=jnp.float32)
    y = jnp.maximum(y + b_ref[...], 0.0)
    o_ref[...] = y
    # hoisted ||ent||^2 (consumed by the all-entity scorer, avoids per-tile redo)
    osq_ref[...] = jnp.sum(y * y, axis=-1, keepdims=True)


def pca_relu(x, w, b, *, tm=512):
    M, K = x.shape
    N = w.shape[1]
    tm = min(tm, M)
    return pl.pallas_call(
        pca_relu_kernel,
        out_shape=(jax.ShapeDtypeStruct((M, N), jnp.float32),
                   jax.ShapeDtypeStruct((M, 1), jnp.float32)),
        grid=(pl.cdiv(M, tm),),
        in_specs=[
            pl.BlockSpec((tm, K), lambda i: (i, 0)),
            pl.BlockSpec((K, N), lambda i: (0, 0)),
            pl.BlockSpec((1, N), lambda i: (0, 0)),
        ],
        out_specs=(pl.BlockSpec((tm, N), lambda i: (i, 0)),
                   pl.BlockSpec((tm, 1), lambda i: (i, 0))),
        compiler_params=pltpu.CompilerParams(dimension_semantics=("parallel",)),
    )(x, w, b.reshape(1, N))


# ----------------------------------------------------------------------------
# Kernel 2: Conv_TransE query tower (bn0 -> conv1d -> bn1 -> relu -> fc -> bn2
#           -> relu), fused.  Conv1d is pre-folded into banded matmul weights
#           t0/t1 of shape (D, F*D); bn1 + conv bias folded into scale/shift.
# ----------------------------------------------------------------------------
def conv_query_kernel(sub_ref, rel_ref, bn0_ref, t0_ref, t1_ref, s1_ref, sh1_ref,
                      fcw_ref, fcb_ref, s2_ref, sh2_ref, q_ref, qsq_ref):
    # bn0 (eval-mode, per-channel affine); scalars live in SMEM
    x0 = sub_ref[...] * bn0_ref[0] + bn0_ref[1]
    x1 = rel_ref[...] * bn0_ref[2] + bn0_ref[3]
    # Conv1d(2 -> num_filt, ker_sz, padding=ker_sz//2) as two MXU matmuls
    z = (jnp.dot(x0, t0_ref[...], preferred_element_type=jnp.float32) +
         jnp.dot(x1, t1_ref[...], preferred_element_type=jnp.float32))   # (TB, F*D)
    h = jnp.maximum(z * s1_ref[...] + sh1_ref[...], 0.0)    # conv bias + bn1 + relu
    # fc -> bn2 -> relu
    y = jnp.dot(h, fcw_ref[...], preferred_element_type=jnp.float32) + fcb_ref[...]
    y = jnp.maximum(y * s2_ref[...] + sh2_ref[...], 0.0)
    q_ref[...] = y
    qsq_ref[...] = jnp.sum(y * y, axis=-1, keepdims=True)   # hoisted ||q||^2


def conv_query(sub_emb, rel_emb, bn0_params, conv_t0, conv_t1, conv_scale1,
               conv_shift1, fc_w_t, fc_b, bn2_scale, bn2_shift, *, tb=128):
    B, D = sub_emb.shape
    FD, E = fc_w_t.shape
    tb = min(tb, B)

    def rep(shape):
        return pl.BlockSpec(shape, lambda i: (0,) * len(shape))

    return pl.pallas_call(
        conv_query_kernel,
        out_shape=(jax.ShapeDtypeStruct((B, E), jnp.float32),
                   jax.ShapeDtypeStruct((B, 1), jnp.float32)),
        grid=(pl.cdiv(B, tb),),
        in_specs=[
            pl.BlockSpec((tb, D), lambda i: (i, 0)),
            pl.BlockSpec((tb, D), lambda i: (i, 0)),
            pl.BlockSpec(memory_space=pltpu.MemorySpace.SMEM),   # bn0 scalars
            rep((D, FD)),        # folded conv weights, channel 0
            rep((D, FD)),        # folded conv weights, channel 1
            rep((1, FD)),        # bn1 scale
            rep((1, FD)),        # bn1 shift (+ conv bias folded in)
            rep((FD, E)),        # fc weight (transposed)
            rep((1, E)),         # fc bias
            rep((1, E)),         # bn2 scale
            rep((1, E)),         # bn2 shift
        ],
        out_specs=(pl.BlockSpec((tb, E), lambda i: (i, 0)),
                   pl.BlockSpec((tb, 1), lambda i: (i, 0))),
        compiler_params=pltpu.CompilerParams(dimension_semantics=("parallel",)),
    )(sub_emb, rel_emb, bn0_params, conv_t0, conv_t1, conv_scale1, conv_shift1,
      fc_w_t, fc_b.reshape(1, E), bn2_scale.reshape(1, E), bn2_shift.reshape(1, E))


# ----------------------------------------------------------------------------
# Kernel 3: TransE scoring against ALL entities (neg_ents == None path)
#   pred[b,e] = sigmoid(gamma - sqrt(max(||q_b||^2 + ||e||^2 - 2 q_b.e, 0)))
#   Entity-tiled; the cross term runs on the MXU (bf16 operands, f32 accum).
# ----------------------------------------------------------------------------
def transe_score_all_kernel(gamma_ref, q_ref, qsq_ref, ent_ref, entsq_ref, o_ref):
    qk = jax.lax.dot_general(
        q_ref[...].astype(jnp.bfloat16), ent_ref[...].astype(jnp.bfloat16),
        dimension_numbers=(((1,), (1,)), ((), ())),          # contract D of both
        preferred_element_type=jnp.float32)                   # (B, TN)
    d2 = qsq_ref[...] + entsq_ref[...] - 2.0 * qk
    dist = jnp.sqrt(jnp.maximum(d2, 0.0))                     # clamp cancellation
    o_ref[...] = jax.nn.sigmoid(gamma_ref[0] - dist)


def transe_score_all(gamma, q, qsq, ent, ent_sq_row, *, tn=2048):
    B, E = q.shape
    N = ent.shape[0]
    tn = min(tn, N)   # 2048: lane-dense multiple of 128, ~2 MiB/buffer at D=128
    return pl.pallas_call(
        transe_score_all_kernel,
        out_shape=jax.ShapeDtypeStruct((B, N), jnp.float32),
        grid=(pl.cdiv(N, tn),),
        in_specs=[
            pl.BlockSpec(memory_space=pltpu.MemorySpace.SMEM),   # gamma scalar
            pl.BlockSpec((B, E), lambda e: (0, 0)),
            pl.BlockSpec((B, 1), lambda e: (0, 0)),
            pl.BlockSpec((tn, E), lambda e: (e, 0)),
            pl.BlockSpec((1, tn), lambda e: (0, e)),
        ],
        out_specs=pl.BlockSpec((B, tn), lambda e: (0, e)),
        compiler_params=pltpu.CompilerParams(dimension_semantics=("parallel",)),
    )(gamma, q, qsq, ent, ent_sq_row)


# ----------------------------------------------------------------------------
# Kernel 4: TransE scoring against gathered negatives (neg_ents != None path)
# ----------------------------------------------------------------------------
def transe_score_neg_kernel(gamma_ref, q_ref, neg_ref, o_ref):
    diff = q_ref[...][:, None, :] - neg_ref[...]              # (TB, K, E)
    dist = jnp.sqrt(jnp.sum(diff * diff, axis=-1))            # (TB, K)
    o_ref[...] = jax.nn.sigmoid(gamma_ref[0] - dist)


def transe_score_neg(gamma, q, neg_emb, *, tb=64):
    B, E = q.shape
    K = neg_emb.shape[1]
    tb = min(tb, B)
    return pl.pallas_call(
        transe_score_neg_kernel,
        out_shape=jax.ShapeDtypeStruct((B, K), jnp.float32),
        grid=(pl.cdiv(B, tb),),
        in_specs=[
            pl.BlockSpec(memory_space=pltpu.MemorySpace.SMEM),   # gamma scalar
            pl.BlockSpec((tb, E), lambda i: (i, 0)),
            pl.BlockSpec((tb, K, E), lambda i: (i, 0, 0)),
        ],
        out_specs=pl.BlockSpec((tb, K), lambda i: (i, 0)),
        compiler_params=pltpu.CompilerParams(dimension_semantics=("parallel",)),
    )(gamma, q, neg_emb)


# ----------------------------------------------------------------------------
# Model wrapper (parameter construction, BN folding, gathers = plain-JAX glue)
# ----------------------------------------------------------------------------
class HRANConvTransEPallas:
    def __init__(self, num_ent, num_rel, init_dim, gcn_dim, embed_dim,
                 num_filt, ker_sz, gamma, key):
        assert embed_dim == gcn_dim, "TransE distance requires embed_dim == gcn_dim"
        assert ker_sz % 2 == 1, "padding = ker_sz // 2 keeps length only for odd ker_sz"
        ks = jax.random.split(key, 12)
        eps = 1e-5
        self.num_ent, self.num_filt, self.ker_sz = num_ent, num_filt, ker_sz

        def bn_fold(k, n):  # eval-mode BatchNorm folded into scale/shift
            kg, kb, km, kv = jax.random.split(k, 4)
            g = 1.0 + 0.1 * jax.random.normal(kg, (n,), jnp.float32)
            b = 0.05 * jax.random.normal(kb, (n,), jnp.float32)
            m = 0.05 * jax.random.normal(km, (n,), jnp.float32)
            v = 1.0 + 0.1 * jnp.abs(jax.random.normal(kv, (n,), jnp.float32))
            scale = g / jnp.sqrt(v + eps)
            return scale, b - m * scale

        # get_param(...) equivalents
        self.init_embed = 0.1 * jax.random.normal(ks[0], (num_ent, init_dim), jnp.float32)
        self.init_rel = 0.1 * jax.random.normal(ks[1], (num_rel * 2, gcn_dim), jnp.float32)
        # SparseInputLinear: uniform(-stdv, stdv), stdv = 1/sqrt(out_dim)
        stdv = 1.0 / np.sqrt(gcn_dim)
        self.pca_w = jax.random.uniform(ks[2], (init_dim, gcn_dim), jnp.float32, -stdv, stdv)
        self.pca_b = jax.random.uniform(ks[3], (gcn_dim,), jnp.float32, -stdv, stdv)

        self.bn0_scale, self.bn0_shift = bn_fold(ks[4], 2)
        self.conv_w = 0.1 * jax.random.normal(ks[5], (num_filt, 2, ker_sz), jnp.float32)
        self.conv_b = 0.1 * jax.random.normal(ks[6], (num_filt,), jnp.float32)
        self.bn1_scale, self.bn1_shift = bn_fold(ks[7], num_filt)
        flat_sz = num_filt * embed_dim
        fstd = 1.0 / np.sqrt(flat_sz)
        self.fc_w_t = jax.random.uniform(ks[8], (flat_sz, embed_dim), jnp.float32, -fstd, fstd)
        self.fc_b = jax.random.uniform(ks[9], (embed_dim,), jnp.float32, -fstd, fstd)
        self.bn2_scale, self.bn2_shift = bn_fold(ks[10], embed_dim)
        self.gamma = jnp.array([gamma], jnp.float32)
        self.ent_bias = jnp.zeros((num_ent,), jnp.float32)  # registered, unused in forward

        # --- fold the 1-D conv (cross-correlation, zero padding) into two banded
        #     matmul weights:  conv_pre[b,f,j] = sum_c sum_i x_c[b,i] * T_c[i, f*D+j]
        #     with T_c[i, f*D+j] = conv_w[f, c, i - j + pad] (0 elsewhere).
        pad = ker_sz // 2
        D = embed_dim
        cw = np.asarray(self.conv_w)
        ii = np.arange(D)[:, None]
        jj = np.arange(D)[None, :]
        kk = ii - jj + pad
        valid = (kk >= 0) & (kk < ker_sz)
        kk = np.clip(kk, 0, ker_sz - 1)
        t_mats = []
        for c in range(2):
            band = cw[:, c, :][:, kk]                       # (F, D, D): [f, i, j]
            band = np.where(valid[None, :, :], band, 0.0)
            t_mats.append(np.transpose(band, (1, 0, 2)).reshape(D, num_filt * D))
        self.conv_t0 = jnp.asarray(t_mats[0], jnp.float32)
        self.conv_t1 = jnp.asarray(t_mats[1], jnp.float32)
        # bn1 + conv bias folded into per-column (F*D) scale / shift
        s1_big = np.repeat(np.asarray(self.bn1_scale), D)
        sh1_big = (np.repeat(np.asarray(self.bn1_shift), D)
                   + np.repeat(np.asarray(self.conv_b), D) * s1_big)
        self.conv_scale1 = jnp.asarray(s1_big, jnp.float32).reshape(1, -1)
        self.conv_shift1 = jnp.asarray(sh1_big, jnp.float32).reshape(1, -1)
        # bn0 scalars packed for SMEM: [scale_ch0, shift_ch0, scale_ch1, shift_ch1]
        self.bn0_params = jnp.stack([self.bn0_scale[0], self.bn0_shift[0],
                                     self.bn0_scale[1], self.bn0_shift[1]])

    def forward(self, sub, rel, neg_ents=None):
        # ---- forward_base (no_enc=False, gcn_layer=0, dropout=identity) ----
        x, x_sq = pca_relu(self.init_embed, self.pca_w, self.pca_b)
        r = self.init_rel
        sub_emb = jnp.take(x, sub, axis=0)      # index_select dim=0
        rel_emb = jnp.take(r, rel, axis=0)

        # ---- Conv_TransE query tower (fused Pallas kernel) ----
        q, q_sq = conv_query(sub_emb, rel_emb, self.bn0_params, self.conv_t0,
                             self.conv_t1, self.conv_scale1, self.conv_shift1,
                             self.fc_w_t, self.fc_b, self.bn2_scale, self.bn2_shift)

        # ---- TransE scoring ----
        if neg_ents is None:
            pred = transe_score_all(self.gamma, q, q_sq, x, x_sq.reshape(1, -1))
        else:
            # TODO(synk): could gather entity rows inside the kernel via scalar
            # prefetch; plain-JAX gather is kept for the small-K negatives path.
            B, K = neg_ents.shape
            neg_emb = jnp.take(x, neg_ents.reshape(-1), axis=0).reshape(B, K, -1)
            pred = transe_score_neg(self.gamma, q, neg_emb)
        return pred


# ----------------------------------------------------------------------------
# Pure-JAX f32 reference (independent ops: lax.conv_general_dilated, jnp.linalg)
# ----------------------------------------------------------------------------
def forward_reference(m, sub, rel, neg_ents=None):
    x = jnp.maximum(m.init_embed @ m.pca_w + m.pca_b, 0.0)
    sub_e = x[sub]
    rel_e = m.init_rel[rel]
    stk = jnp.stack([sub_e, rel_e], axis=1)                          # (B, 2, D)
    h = stk * m.bn0_scale[None, :, None] + m.bn0_shift[None, :, None]
    pad = m.ker_sz // 2
    conv = jax.lax.conv_general_dilated(
        h, m.conv_w, window_strides=(1,), padding=[(pad, pad)],
        dimension_numbers=("NCH", "OIH", "NCH"))                     # (B, F, D)
    conv = conv + m.conv_b[None, :, None]
    hh = jnp.maximum(conv * m.bn1_scale[None, :, None] + m.bn1_shift[None, :, None], 0.0)
    y = hh.reshape(hh.shape[0], -1) @ m.fc_w_t + m.fc_b
    y = jnp.maximum(y * m.bn2_scale + m.bn2_shift, 0.0)
    if neg_ents is None:
        d = jnp.linalg.norm(y[:, None, :] - x[None, :, :], axis=-1)
    else:
        d = jnp.linalg.norm(y[:, None, :] - x[neg_ents], axis=-1)
    return jax.nn.sigmoid(m.gamma[0] - d)


if __name__ == "__main__":
    num_ent, num_rel = 4096, 5            # multi-tile entity axis for the scorer
    init_dim = gcn_dim = embed_dim = 128
    num_filt, ker_sz = 8, 3
    batch, n_neg = 8, 128

    model = HRANConvTransEPallas(num_ent, num_rel, init_dim, gcn_dim, embed_dim,
                                 num_filt, ker_sz, gamma=2.0,
                                 key=jax.random.PRNGKey(0))

    ks, kr, kn = jax.random.split(jax.random.PRNGKey(1), 3)
    sub = jax.random.randint(ks, (batch,), 0, num_ent, dtype=jnp.int32)
    rel = jax.random.randint(kr, (batch,), 0, num_rel * 2, dtype=jnp.int32)
    neg_ents = jax.random.randint(kn, (batch, n_neg), 0, num_ent, dtype=jnp.int32)

    # neg_ents == None path: score against every entity -> (batch, num_ent)
    pred_all = model.forward(sub, rel, None)
    jax.block_until_ready(pred_all)
    assert pred_all.shape == (batch, num_ent)
    assert bool(jnp.all(jnp.isfinite(pred_all)))

    # neg_ents path: score against sampled negatives -> (batch, n_neg)
    pred_neg = model.forward(sub, rel, neg_ents)
    jax.block_until_ready(pred_neg)
    assert pred_neg.shape == (batch, n_neg)
    assert bool(jnp.all(jnp.isfinite(pred_neg)))

    # Numerical check vs f32 reference (kernels use bf16 MXU operands -> loose tol)
    ref_all = forward_reference(model, sub, rel, None)
    ref_neg = forward_reference(model, sub, rel, neg_ents)
    np.testing.assert_allclose(np.asarray(pred_all), np.asarray(ref_all),
                               atol=3e-2, rtol=0)
    np.testing.assert_allclose(np.asarray(pred_neg), np.asarray(ref_neg),
                               atol=3e-2, rtol=0)

    print("KERNEL_OK")
</pallas_src>

<mosaic_0001>
module attributes {stable_mosaic.version = 11 : i64} {
  func.func @pca_relu_kernel(%arg0: i32, %arg1: memref<512x128xf32, #tpu.memory_space<vmem>>, %arg2: memref<128x128xf32, #tpu.memory_space<vmem>>, %arg3: memref<1x128xf32, #tpu.memory_space<vmem>>, %arg4: memref<512x128xf32, #tpu.memory_space<vmem>>, %arg5: memref<512x1xf32, #tpu.memory_space<vmem>>) attributes {dimension_semantics = [#tpu.dimension_semantics<parallel>], iteration_bounds = array<i64: 8>, scalar_prefetch = 0 : i64, scratch_operands = 0 : i64, tpu.core_type = #tpu.core_type<tc>, window_params = [{transform_indices = @transform_0, window_bounds = array<i64: 512, 128>}, {pipeline_mode = #tpu.pipeline_mode<synchronous>, transform_indices = @transform_1, window_bounds = array<i64: 128, 128>}, {pipeline_mode = #tpu.pipeline_mode<synchronous>, transform_indices = @transform_2, window_bounds = array<i64: 1, 128>}, {transform_indices = @transform_3, window_bounds = array<i64: 512, 128>}, {transform_indices = @transform_4, window_bounds = array<i64: 512, 1>}]} {
    %c0 = arith.constant 0 : index
    %c0_0 = arith.constant 0 : index
    %0 = vector.load %arg1[%c0, %c0_0] : memref<512x128xf32, #tpu.memory_space<vmem>>, vector<512x128xf32>
    %1 = arith.truncf %0 : vector<512x128xf32> to vector<512x128xbf16>
    %c0_1 = arith.constant 0 : index
    %c0_2 = arith.constant 0 : index
    %2 = vector.load %arg2[%c0_1, %c0_2] : memref<128x128xf32, #tpu.memory_space<vmem>>, vector<128x128xf32>
    %3 = arith.truncf %2 : vector<128x128xf32> to vector<128x128xbf16>
    %cst = arith.constant dense<0.000000e+00> : vector<512x128xf32>
    %4 = tpu.matmul %1, %3, %cst {dimension_numbers = #tpu.dot_dimension_numbers<[1], [0], [0], [1], [0, 0, 1, 1], [], []>} : vector<512x128xbf16>, vector<128x128xbf16>, vector<512x128xf32> -> vector<512x128xf32>
    %c0_3 = arith.constant 0 : index
    %c0_4 = arith.constant 0 : index
    %5 = vector.load %arg3[%c0_3, %c0_4] : memref<1x128xf32, #tpu.memory_space<vmem>>, vector<1x128xf32>
    %6 = vector.broadcast %5 : vector<1x128xf32> to vector<512x128xf32>
    %7 = arith.addf %4, %6 : vector<512x128xf32>
    %cst_5 = arith.constant 0.000000e+00 : f32
    %8 = vector.broadcast %cst_5 : f32 to vector<512x128xf32>
    %9 = arith.maximumf %7, %8 : vector<512x128xf32>
    %c0_6 = arith.constant 0 : index
    %c0_7 = arith.constant 0 : index
    %10 = vector.load %arg4[%c0_6, %c0_7] : memref<512x128xf32, #tpu.memory_space<vmem>>, vector<512x128xf32>
    tpu.vector_store %arg4[%c0_6, %c0_7], %9 {strides = array<i32>} : memref<512x128xf32, #tpu.memory_space<vmem>>, vector<512x128xf32>,
    %11 = arith.mulf %9, %9 : vector<512x128xf32>
    %cst_8 = arith.constant dense<0.000000e+00> : vector<512xf32>
    %12 = vector.multi_reduction <add>, %11, %cst_8 [1] : vector<512x128xf32> to vector<512xf32>
    %13 = vector.shape_cast %12 : vector<512xf32> to vector<512x1xf32>
    %c0_9 = arith.constant 0 : index
    %c0_10 = arith.constant 0 : index
    %14 = vector.load %arg5[%c0_9, %c0_10] : memref<512x1xf32, #tpu.memory_space<vmem>>, vector<512x1xf32>
    tpu.vector_store %arg5[%c0_9, %c0_10], %13 {strides = array<i32>} : memref<512x1xf32, #tpu.memory_space<vmem>>, vector<512x1xf32>,
    return
  }
  func.func @transform_0(%arg0: i32) -> (i32, i32) {
    %c0_i32 = arith.constant 0 : i32
    %c0_i32_0 = arith.constant 0 : i32
    return %arg0, %c0_i32 : i32, i32
  }
  func.func @transform_1(%arg0: i32) -> (i32, i32) {
    %c0_i32 = arith.constant 0 : i32
    %c0_i32_0 = arith.constant 0 : i32
    %c0_i32_1 = arith.constant 0 : i32
    return %c0_i32, %c0_i32_0 : i32, i32
  }
  func.func @transform_2(%arg0: i32) -> (i32, i32) {
    %c0_i32 = arith.constant 0 : i32
    %c0_i32_0 = arith.constant 0 : i32
    %c0_i32_1 = arith.constant 0 : i32
    return %c0_i32, %c0_i32_0 : i32, i32
  }
  func.func @transform_3(%arg0: i32) -> (i32, i32) {
    %c0_i32 = arith.constant 0 : i32
    %c0_i32_0 = arith.constant 0 : i32
    return %arg0, %c0_i32 : i32, i32
  }
  func.func @transform_4(%arg0: i32) -> (i32, i32) {
    %c0_i32 = arith.constant 0 : i32
    %c0_i32_0 = arith.constant 0 : i32
    return %arg0, %c0_i32 : i32, i32
  }
}

</mosaic_0001>

<llo_original>
// kernel: tpu_custom_call.1
$region0: #{tpu_custom_call.1}
  #allocation0 [shape = 'u32[]', space=smem, size = 0x4, offset = 0x4, fixed_abs, tag = 'smem constant byte address 0x4 - core index']
  #allocation1 [shape = 'u32[144,128]{1,0:T(1,128)}', space=vmem, size = 0x12000, scoped, tag = 'internal scratch']
  %s0 = inlined_call_operand.hbm [shape: f32[4096,128], index: 0, kind: input, shape index: {}]
  %s1 = inlined_call_operand.hbm [shape: f32[128,128], index: 1, kind: input, shape index: {}]
  %s2 = inlined_call_operand.hbm [shape: f32[1,128], index: 2, kind: input, shape index: {}]
  %s3 = inlined_call_operand.hbm [shape: f32[4096,128], index: 3, kind: output, shape index: {0}]
  %s4 = inlined_call_operand.vmem [shape: f32[4096,1], index: 4, kind: output, shape index: {1}]
  %5 = xla_tuple %s3, %s4
  %s6 = sld [smem:[#allocation0]]
  $region65: #{tpu_custom_call.1} parent=0
    _
  %s8 = ssub.s32 1, %s6
  %s9 = scalar_select 0, %s8, %s6
  $region1: #{tpu_custom_call.1} parent=0
    #allocation2 [shape = 'u8[524288]{0}', space=vmem, size = 0x80000, scoped, tag = 'input window, operand 0']
    #allocation3 [shape = 's32[2]{0}', space=sflag, size = 0x8, scoped, tag = 'scoped memory for tpu_custom_call.1']
    #allocation4 [shape = 's32[2]{0}', space=sflag, size = 0x8, scoped, tag = 'scoped memory for tpu_custom_call.1']
    #allocation5 [shape = 'u8[65536]{0}', space=vmem, size = 0x10000, scoped, tag = 'input window, operand 1, single buffered']
    #allocation6 [shape = 's32[1]{0}', space=sflag, size = 0x4, scoped, tag = 'scoped memory for tpu_custom_call.1']
    #allocation7 [shape = 'u8[512]{0}', space=vmem, size = 0x400, scoped, tag = 'input window, operand 2, single buffered']
    #allocation8 [shape = 'u8[524288]{0}', space=vmem, size = 0x80000, scoped, tag = 'output window, operand 0']
    %10 = vsyncpa [#allocation3], 0
    %s11 = scalar_lea.sflag [#allocation3], 1
    %12 = vsyncpa %s11, 0
    %13 = vsyncpa [#allocation6], 0
    %14 = vsyncpa [#allocation4], 0
    %s15 = scalar_lea.sflag [#allocation4], 1
    %16 = vsyncpa %s15, 0
    loop: start=0, step=1, limit=10
    $region2: #{tpu_custom_call.1} parent=1 // loop_pre_header
      _
    $region3: #{tpu_custom_call.1} parent=1 // loop_header
      %s18 = sphi 0, %s22
      %p19 = scmp.ge.s32.totalorder %s18, 10
      %s28 = sphi 0, %s30
      %s31 = sphi 0, %s28
      %s32 = sphi 0, %s31
      %s48 = sphi 0, %s32
      %s52 = sphi 0, %s52
      %s54 = sphi 0, %s52
      %s55 = sphi 0, %s54
      %s69 = sphi 0, %s55
      %s73 = sphi 0, %s73
      %s75 = sphi 0, %s73
      %s76 = sphi 0, %s75
      %s90 = sphi 0, %s76
      %s96 = sphi 0, %s98
      %s99 = sphi 0, %s96
      %s100 = sphi 0, %s99
      %s116 = sphi 0, %s100
      %s122 = sphi 0, %s124
      %s125 = sphi 0, %s122
      %s126 = sphi 0, %s125
      %s142 = sphi 0, %s126
    $region4: #{tpu_custom_call.1} parent=1 // loop_header_branch
      %21 = sbr.rel (%p19) target = $region8
    $region5: #{tpu_custom_call.1} parent=1 // loop_body
      %s23 = ssub.s32 %s18, 1
      %s24 = ssub.s32 %s18, 2
      %s25 = sadd.s32 %s18, 1
      %s26 = ssub.s32 %s18, %s25
      %p27 = scmp.eq.s32.totalorder %s26, 0
      %s29 = sadd.s32 %s28, 1
      %s30 = scalar_select %p27, %s28, %s29
      %p33 = pneg %p27
      %p34 = scmp.eq.s32.totalorder %s18, 7
      %p35 = por %p33, %p34
      %p36 = scmp.ne.s32.totalorder %s28, %s31
      %p37 = scmp.eq.s32.totalorder %s18, 0
      %p38 = por %p36, %p37
      %p39 = scmp.ne.s32.totalorder %s28, %s31
      %p40 = scmp.eq.s32.totalorder %s23, 7
      %p41 = por %p39, %p40
      %p42 = scmp.ne.s32.totalorder %s31, %s32
      %p43 = scmp.eq.s32.totalorder %s23, 0
      %p44 = por %p42, %p43
      %p45 = scmp.ne.s32.totalorder %s31, %s32
      %p46 = scmp.eq.s32.totalorder %s24, 7
      %p47 = por %p45, %p46
      %p49 = scmp.ne.s32.totalorder %s32, %s48
      %p50 = scmp.eq.s32.totalorder %s24, 0
      %p51 = por %p49, %p50
      %s53 = sadd.s32 %s52, 1
      %p56 = scmp.eq.s32.totalorder %s18, 7
      %p57 = scmp.ne.s32.totalorder %s52, %s54
      %p58 = scmp.eq.s32.totalorder %s18, 0
      %p59 = por %p57, %p58
      %p60 = scmp.ne.s32.totalorder %s52, %s54
      %p61 = scmp.eq.s32.totalorder %s23, 7
      %p62 = por %p60, %p61
      %p63 = scmp.ne.s32.totalorder %s54, %s55
      %p64 = scmp.eq.s32.totalorder %s23, 0
      %p65 = por %p63, %p64
      %p66 = scmp.ne.s32.totalorder %s54, %s55
      %p67 = scmp.eq.s32.totalorder %s24, 7
      %p68 = por %p66, %p67
      %p70 = scmp.ne.s32.totalorder %s55, %s69
      %p71 = scmp.eq.s32.totalorder %s24, 0
      %p72 = por %p70, %p71
      %s74 = sadd.s32 %s73, 1
      %p77 = scmp.eq.s32.totalorder %s18, 7
      %p78 = scmp.ne.s32.totalorder %s73, %s75
      %p79 = scmp.eq.s32.totalorder %s18, 0
      %p80 = por %p78, %p79
      %p81 = scmp.ne.s32.totalorder %s73, %s75
      %p82 = scmp.eq.s32.totalorder %s23, 7
      %p83 = por %p81, %p82
      %p84 = scmp.ne.s32.totalorder %s75, %s76
      %p85 = scmp.eq.s32.totalorder %s23, 0
      %p86 = por %p84, %p85
      %p87 = scmp.ne.s32.totalorder %s75, %s76
      %p88 = scmp.eq.s32.totalorder %s24, 7
      %p89 = por %p87, %p88
      %p91 = scmp.ne.s32.totalorder %s76, %s90
      %p92 = scmp.eq.s32.totalorder %s24, 0
      %p93 = por %p91, %p92
      %s94 = ssub.s32 %s18, %s25
      %p95 = scmp.eq.s32.totalorder %s94, 0
      %s97 = sadd.s32 %s96, 1
      %s98 = scalar_select %p95, %s96, %s97
      %p101 = pneg %p95
      %p102 = scmp.eq.s32.totalorder %s18, 7
      %p103 = por %p101, %p102
      %p104 = scmp.ne.s32.totalorder %s96, %s99
      %p105 = scmp.eq.s32.totalorder %s18, 0
      %p106 = por %p104, %p105
      %p107 = scmp.ne.s32.totalorder %s96, %s99
      %p108 = scmp.eq.s32.totalorder %s23, 7
      %p109 = por %p107, %p108
      %p110 = scmp.ne.s32.totalorder %s99, %s100
      %p111 = scmp.eq.s32.totalorder %s23, 0
      %p112 = por %p110, %p111
      %p113 = scmp.ne.s32.totalorder %s99, %s100
      %p114 = scmp.eq.s32.totalorder %s24, 7
      %p115 = por %p113, %p114
      %p117 = scmp.ne.s32.totalorder %s100, %s116
      %p118 = scmp.eq.s32.totalorder %s24, 0
      %p119 = por %p117, %p118
      %s120 = ssub.s32 %s18, %s25
      %p121 = scmp.eq.s32.totalorder %s120, 0
      %s123 = sadd.s32 %s122, 1
      %s124 = scalar_select %p121, %s122, %s123
      %p127 = pneg %p121
      %p128 = scmp.eq.s32.totalorder %s18, 7
      %p129 = por %p127, %p128
      %p130 = scmp.ne.s32.totalorder %s122, %s125
      %p131 = scmp.eq.s32.totalorder %s18, 0
      %p132 = por %p130, %p131
      %p133 = scmp.ne.s32.totalorder %s122, %s125
      %p134 = scmp.eq.s32.totalorder %s23, 7
      %p135 = por %p133, %p134
      %p136 = scmp.ne.s32.totalorder %s125, %s126
      %p137 = scmp.eq.s32.totalorder %s23, 0
      %p138 = por %p136, %p137
      %p139 = scmp.ne.s32.totalorder %s125, %s126
      %p140 = scmp.eq.s32.totalorder %s24, 7
      %p141 = por %p139, %p140
      %p143 = scmp.ne.s32.totalorder %s126, %s142
      %p144 = scmp.eq.s32.totalorder %s24, 0
      %p145 = por %p143, %p144
      %p146 = scmp.le.s32.totalorder 1, %s18
      %p147 = scmp.lt.s32.totalorder %s18, 9
      %p148 = pnand %p146, %p147
      %p149 = pneg %p148
      // Predicated region
      $region9: #{tpu_custom_call.1} parent=5 // pred_check
        _
      $region10: #{tpu_custom_call.1} parent=5 // pred_check_branch
        %151 = sbr.rel (%p148) target = $region12
      $region11: #{tpu_custom_call.1} parent=5 // pred_region
        %s152 = ssub.s32 %s18, 1
        // Predicated region
        $region13: #{tpu_custom_call.1} parent=11 // pred_check
          %p153 = pneg %p65
        $region14: #{tpu_custom_call.1} parent=11 // pred_check_branch
          %155 = sbr.rel (%p153) target = $region16
        $region15: #{tpu_custom_call.1} parent=11 // pred_region
          %s157 = ssub.s32 2048, 2048
          %158 = vsyncadd [#allocation6], %s157
          %s159 = sshll.u32 [#allocation5], 4
          %s160 = int_to_ptr.vmem [resolvable:$true] %s159
          %165 = dma.hbm_to_vmem [thread:$0]  %s1, 2048, %s160, [#allocation6], 128, 128, 8
        $region16: #{tpu_custom_call.1} parent=11 // pred_fallthru
          _
        // Predicated region
        $region17: #{tpu_custom_call.1} parent=11 // pred_check
          %p166 = pneg %p86
        $region18: #{tpu_custom_call.1} parent=11 // pred_check_branch
          %168 = sbr.rel (%p166) target = $region20
        $region19: #{tpu_custom_call.1} parent=11 // pred_region
          %s170 = ssub.s32 16, 16
          %171 = vsyncadd [#allocation6], %s170
          %s173 = sshll.u32 [#allocation7], 4
          %s174 = int_to_ptr.vmem [resolvable:$true] %s173
          %176 = dma.hbm_to_vmem [thread:$0]  %s2, 16, %s174, [#allocation6]
        $region20: #{tpu_custom_call.1} parent=11 // pred_fallthru
          _
      $region12: #{tpu_custom_call.1} parent=5 // pred_fallthru
        _
      %p177 = scmp.lt.s32.totalorder %s18, 8
      // Predicated region
      $region21: #{tpu_custom_call.1} parent=5 // pred_check
        %p178 = pneg %p177
      $region22: #{tpu_custom_call.1} parent=5 // pred_check_branch
        %180 = sbr.rel (%p178) target = $region24
      $region23: #{tpu_custom_call.1} parent=5 // pred_region
        // Predicated region
        $region25: #{tpu_custom_call.1} parent=23 // pred_check
          %p181 = pneg %p38
        $region26: #{tpu_custom_call.1} parent=23 // pred_check_branch
          %183 = sbr.rel (%p181) target = $region28
        $region27: #{tpu_custom_call.1} parent=23 // pred_region
          %s184 = sand.u32 %s28, 1
          %s185 = scalar_lea.sflag [#allocation3], %s184
          %s186 = sand.u32 %s28, 1
          %s187 = smul.addr %s186, 512
          %s188 = scalar_lea.vmem [#allocation2], %s187
          %s189 = smul.u32 64, %s18
          %s191 = ssub.s32 8192, 8192
          %192 = vsyncadd %s185, %s191
          %s193 = smul.addr %s189, 128
          %s194 = scalar_lea.hbm %s0, %s193
          %s195 = sshll.u32 %s188, 4
          %s196 = int_to_ptr.vmem [resolvable:$true] %s195
          %201 = dma.hbm_to_vmem [thread:$0]  %s194, 8192, %s196, %s185, 128, 128, 8
        $region28: #{tpu_custom_call.1} parent=23 // pred_fallthru
          _
      $region24: #{tpu_custom_call.1} parent=5 // pred_fallthru
        _
      %p202 = scmp.le.s32.totalorder 1, %s18
      %p203 = scmp.lt.s32.totalorder %s18, 9
      %p204 = pnand %p202, %p203
      %p205 = pneg %p204
      // Predicated region
      $region29: #{tpu_custom_call.1} parent=5 // pred_check
        _
      $region30: #{tpu_custom_call.1} parent=5 // pred_check_branch
        %207 = sbr.rel (%p204) target = $region32
      $region31: #{tpu_custom_call.1} parent=5 // pred_region
        %s208 = ssub.s32 %s18, 1
        %s209 = sand.u32 %s31, 1
        %s210 = scalar_lea.sflag [#allocation3], %s209
        %s211 = sand.u32 %s31, 1
        %s212 = smul.addr %s211, 512
        %s213 = scalar_lea.vmem [#allocation2], %s212
        // Predicated region
        $region33: #{tpu_custom_call.1} parent=31 // pred_check
          %p214 = pneg %p44
        $region34: #{tpu_custom_call.1} parent=31 // pred_check_branch
          %216 = sbr.rel (%p214) target = $region36
        $region35: #{tpu_custom_call.1} parent=31 // pred_region
          %217 = dma.done %s210, 8192
        $region36: #{tpu_custom_call.1} parent=31 // pred_fallthru
          _
        // Predicated region
        $region37: #{tpu_custom_call.1} parent=31 // pred_check
          %p218 = pneg %p65
        $region38: #{tpu_custom_call.1} parent=31 // pred_check_branch
          %220 = sbr.rel (%p218) target = $region40
        $region39: #{tpu_custom_call.1} parent=31 // pred_region
          %221 = dma.done [#allocation6], 2048
        $region40: #{tpu_custom_call.1} parent=31 // pred_fallthru
          _
        // Predicated region
        $region41: #{tpu_custom_call.1} parent=31 // pred_check
          %p222 = pneg %p86
        $region42: #{tpu_custom_call.1} parent=31 // pred_check_branch
          %224 = sbr.rel (%p222) target = $region44
        $region43: #{tpu_custom_call.1} parent=31 // pred_region
          %225 = dma.done [#allocation6], 16
        $region44: #{tpu_custom_call.1} parent=31 // pred_fallthru
          _
        %s226 = sand.u32 %s31, 1
        %s227 = scalar_lea.sflag [#allocation3], %s226
        %s228 = sand.u32 %s31, 1
        %s229 = smul.addr %s228, 512
        %s230 = scalar_lea.vmem [#allocation2], %s229
        %p231 = pneg %p44
        %p232 = pneg %p41
        %p233 = pneg %p65
        %p234 = pneg %p62
        %p235 = pneg %p86
        %p236 = pneg %p83
        %p237 = pneg %p112
        %p238 = pneg %p109
        %s239 = sand.u32 %s99, 1
        %s240 = scalar_lea.sflag [#allocation4], %s239
        %s241 = sand.u32 %s99, 1
        %s242 = smul.addr %s241, 512
        %s243 = scalar_lea.vmem [#allocation8], %s242
        %p244 = pneg %p138
        %p245 = pneg %p135
        %s246 = smul.u32 64, %s23
        %p247 = scmp.lt.s32.totalorder %s246, 511
        %s248 = scalar_select %p247, %s246, 511
        %s249 = smul.addr %s248, 8
        %s250 = scalar_lea.vmem %s4, %s249
        %s251 = smul.u32 64, %s23
        %s252 = smul.u32 64, %s23
        %s253 = smul.u32 64, %s23
        %p254 = scmp.lt.s32.totalorder %s253, 511
        %s255 = scalar_select %p254, %s253, 511
        %s256 = smul.addr %s255, 8
        %s257 = scalar_lea.vmem %s4, %s256
        %s258 = smul.u32 64, %s23
        %v260 = vld [vmem:[%s213] sm:$0xff]
        %v261 = vld [vmem:[%s213 + $0x8] sm:$0xff]
        %v262 = vld [vmem:[%s213 + $0x10] sm:$0xff]
        %v263 = vld [vmem:[%s213 + $0x18] sm:$0xff]
        %v264 = vld [vmem:[%s213 + $0x20] sm:$0xff]
        %v265 = vld [vmem:[%s213 + $0x28] sm:$0xff]
        %v266 = vld [vmem:[%s213 + $0x30] sm:$0xff]
        %v267 = vld [vmem:[%s213 + $0x38] sm:$0xff]
        %v268 = vld [vmem:[%s213 + $0x40] sm:$0xff]
        %v269 = vld [vmem:[%s213 + $0x48] sm:$0xff]
        %v270 = vld [vmem:[%s213 + $0x50] sm:$0xff]
        %v271 = vld [vmem:[%s213 + $0x58] sm:$0xff]
        %v272 = vld [vmem:[%s213 + $0x60] sm:$0xff]
        %v273 = vld [vmem:[%s213 + $0x68] sm:$0xff]
        %v274 = vld [vmem:[%s213 + $0x70] sm:$0xff]
        %v275 = vld [vmem:[%s213 + $0x78] sm:$0xff]
        %v276 = vld [vmem:[%s213 + $0x80] sm:$0xff]
        %v277 = vld [vmem:[%s213 + $0x88] sm:$0xff]
        %v278 = vld [vmem:[%s213 + $0x90] sm:$0xff]
        %v279 = vld [vmem:[%s213 + $0x98] sm:$0xff]
        %v280 = vld [vmem:[%s213 + $0xa0] sm:$0xff]
        %v281 = vld [vmem:[%s213 + $0xa8] sm:$0xff]
        %v282 = vld [vmem:[%s213 + $0xb0] sm:$0xff]
        %v283 = vld [vmem:[%s213 + $0xb8] sm:$0xff]
        %v284 = vld [vmem:[%s213 + $0xc0] sm:$0xff]
        %v285 = vld [vmem:[%s213 + $0xc8] sm:$0xff]
        %v286 = vld [vmem:[%s213 + $0xd0] sm:$0xff]
        %v287 = vld [vmem:[%s213 + $0xd8] sm:$0xff]
        %v288 = vld [vmem:[%s213 + $0xe0] sm:$0xff]
        %v289 = vld [vmem:[%s213 + $0xe8] sm:$0xff]
        %v290 = vld [vmem:[%s213 + $0xf0] sm:$0xff]
        %v291 = vld [vmem:[%s213 + $0xf8] sm:$0xff]
        %v292 = vld [vmem:[%s213 + $0x100] sm:$0xff]
        %v293 = vld [vmem:[%s213 + $0x108] sm:$0xff]
        %v294 = vld [vmem:[%s213 + $0x110] sm:$0xff]
        %v295 = vld [vmem:[%s213 + $0x118] sm:$0xff]
        %v296 = vld [vmem:[%s213 + $0x120] sm:$0xff]
        %v297 = vld [vmem:[%s213 + $0x128] sm:$0xff]
        %v298 = vld [vmem:[%s213 + $0x130] sm:$0xff]
        %v299 = vld [vmem:[%s213 + $0x138] sm:$0xff]
        %v300 = vld [vmem:[%s213 + $0x140] sm:$0xff]
        %v301 = vld [vmem:[%s213 + $0x148] sm:$0xff]
        %v302 = vld [vmem:[%s213 + $0x150] sm:$0xff]
        %v303 = vld [vmem:[%s213 + $0x158] sm:$0xff]
        %v304 = vld [vmem:[%s213 + $0x160] sm:$0xff]
        %v305 = vld [vmem:[%s213 + $0x168] sm:$0xff]
        %v306 = vld [vmem:[%s213 + $0x170] sm:$0xff]
        %v307 = vld [vmem:[%s213 + $0x178] sm:$0xff]
        %v308 = vld [vmem:[%s213 + $0x180] sm:$0xff]
        %v309 = vld [vmem:[%s213 + $0x188] sm:$0xff]
        %v310 = vld [vmem:[%s213 + $0x190] sm:$0xff]
        %v311 = vld [vmem:[%s213 + $0x198] sm:$0xff]
        %v312 = vld [vmem:[%s213 + $0x1a0] sm:$0xff]
        %v313 = vld [vmem:[%s213 + $0x1a8] sm:$0xff]
        %v314 = vld [vmem:[%s213 + $0x1b0] sm:$0xff]
        %v315 = vld [vmem:[%s213 + $0x1b8] sm:$0xff]
        %v316 = vld [vmem:[%s213 + $0x1c0] sm:$0xff]
        %v317 = vld [vmem:[%s213 + $0x1c8] sm:$0xff]
        %v318 = vld [vmem:[%s213 + $0x1d0] sm:$0xff]
        %v319 = vld [vmem:[%s213 + $0x1d8] sm:$0xff]
        %v320 = vld [vmem:[%s213 + $0x1e0] sm:$0xff]
        %v321 = vld [vmem:[%s213 + $0x1e8] sm:$0xff]
        %v322 = vld [vmem:[%s213 + $0x1f0] sm:$0xff]
        %v323 = vld [vmem:[%s213 + $0x1f8] sm:$0xff]
        %v324 = vpack.c.bf16 %v261, %v260
        %v325 = vpack.c.bf16 %v263, %v262
        %v326 = vpack.c.bf16 %v265, %v264
        %v327 = vpack.c.bf16 %v267, %v266
        %v328 = vpack.c.bf16 %v269, %v268
        %v329 = vpack.c.bf16 %v271, %v270
        %v330 = vpack.c.bf16 %v273, %v272
        %v331 = vpack.c.bf16 %v275, %v274
        %v332 = vpack.c.bf16 %v277, %v276
        %v333 = vpack.c.bf16 %v279, %v278
        %v334 = vpack.c.bf16 %v281, %v280
        %v335 = vpack.c.bf16 %v283, %v282
        %v336 = vpack.c.bf16 %v285, %v284
        %v337 = vpack.c.bf16 %v287, %v286
        %v338 = vpack.c.bf16 %v289, %v288
        %v339 = vpack.c.bf16 %v291, %v290
        %v340 = vpack.c.bf16 %v293, %v292
        %v341 = vpack.c.bf16 %v295, %v294
        %v342 = vpack.c.bf16 %v297, %v296
        %v343 = vpack.c.bf16 %v299, %v298
        %v344 = vpack.c.bf16 %v301, %v300
        %v345 = vpack.c.bf16 %v303, %v302
        %v346 = vpack.c.bf16 %v305, %v304
        %v347 = vpack.c.bf16 %v307, %v306
        %v348 = vpack.c.bf16 %v309, %v308
        %v349 = vpack.c.bf16 %v311, %v310
        %v350 = vpack.c.bf16 %v313, %v312
        %v351 = vpack.c.bf16 %v315, %v314
        %v352 = vpack.c.bf16 %v317, %v316
        %v353 = vpack.c.bf16 %v319, %v318
        %v354 = vpack.c.bf16 %v321, %v320
        %v355 = vpack.c.bf16 %v323, %v322
        %v356 = vld [vmem:[#allocation5] sm:$0xff]
        %v357 = vld [vmem:[#allocation5 + $0x8] sm:$0xff]
        %v358 = vld [vmem:[#allocation5 + $0x10] sm:$0xff]
        %v359 = vld [vmem:[#allocation5 + $0x18] sm:$0xff]
        %v360 = vld [vmem:[#allocation5 + $0x20] sm:$0xff]
        %v361 = vld [vmem:[#allocation5 + $0x28] sm:$0xff]
        %v362 = vld [vmem:[#allocation5 + $0x30] sm:$0xff]
        %v363 = vld [vmem:[#allocation5 + $0x38] sm:$0xff]
        %v364 = vld [vmem:[#allocation5 + $0x40] sm:$0xff]
        %v365 = vld [vmem:[#allocation5 + $0x48] sm:$0xff]
        %v366 = vld [vmem:[#allocation5 + $0x50] sm:$0xff]
        %v367 = vld [vmem:[#allocation5 + $0x58] sm:$0xff]
        %v368 = vld [vmem:[#allocation5 + $0x60] sm:$0xff]
        %v369 = vld [vmem:[#allocation5 + $0x68] sm:$0xff]
        %v370 = vld [vmem:[#allocation5 + $0x70] sm:$0xff]
        %v371 = vld [vmem:[#allocation5 + $0x78] sm:$0xff]
        %v372 = vpack.c.bf16 %v357, %v356
        %v373 = vpack.c.bf16 %v359, %v358
        %v374 = vpack.c.bf16 %v361, %v360
        %v375 = vpack.c.bf16 %v363, %v362
        %v376 = vpack.c.bf16 %v365, %v364
        %v377 = vpack.c.bf16 %v367, %v366
        %v378 = vpack.c.bf16 %v369, %v368
        %v379 = vpack.c.bf16 %v371, %v370
        %v380 = vld [vmem:[#allocation7] sm:$0x1]
        %v382 = vlaneseq
        %v383 = vshrl.u32 %v382, 7
        %v384 = vsub.s32 0, %v383
        %v385 = vrot.slane %v380, %v384
        %387 = vmatprep.subr.bf16.mxu0 0
        %388 = vmatpush1.bf16.msra.mxu0 %v379
        %389 = vmatprep.subr.bf16.mxu0 0
        %390 = vmatpush1.bf16.msra.mxu0 %v378
        %391 = vmatprep.subr.bf16.mxu0 0
        %392 = vmatpush1.bf16.msra.mxu0 %v377
        %393 = vmatprep.subr.bf16.mxu0 0
        %394 = vmatpush1.bf16.msra.mxu0 %v376
        %395 = vmatprep.subr.bf16.mxu0 0
        %396 = vmatpush1.bf16.msra.mxu0 %v375
        %397 = vmatprep.subr.bf16.mxu0 0
        %398 = vmatpush1.bf16.msra.mxu0 %v374
        %399 = vmatprep.subr.bf16.mxu0 0
        %400 = vmatpush1.bf16.msra.mxu0 %v373
        %401 = vmatprep.subr.bf16.mxu0 0
        %402 = vmatpush1.bf16.msra.mxu0 %v372
        %403 = vmatprep.subr.bf16.mxu0 0
        %404 = vmatpush2.bf16.msra.mxu0 0
        %405 = vmatprep.subr.bf16.mxu0 0
        %406 = vmatpush2.bf16.msra.mxu0 0
        %407 = vmatprep.subr.bf16.mxu0 0
        %408 = vmatpush2.bf16.msra.mxu0 0
        %409 = vmatprep.subr.bf16.mxu0 0
        %410 = vmatpush2.bf16.msra.mxu0 0
        %411 = vmatprep.subr.bf16.mxu0 0
        %412 = vmatpush2.bf16.msra.mxu0 0
        %413 = vmatprep.subr.bf16.mxu0 0
        %414 = vmatpush2.bf16.msra.mxu0 0
        %415 = vmatprep.subr.bf16.mxu0 0
        %416 = vmatpush2.bf16.msra.mxu0 0
        %417 = vmatprep.subr.bf16.mxu0 0
        %418 = vmatpush2.bf16.msra.mxu0 0
        %419 = vmatprep.mubr.bf16.mxu0 0
        %420 = vmatmul.mubr.bf16.gmra.mxu0 %v324
        %v421 = vpop.f32.mrf.mxu0
        %v422 = vadd.f32 %v385, %v421
        %v423 = vpop.f32.mrf.mxu0
        %v424 = vpop.f32.mrf.mxu0
        %v425 = vadd.f32 %v385, %v424
        %v426 = vpop.f32.mrf.mxu0
        %427 = vmatprep.mubr.bf16.mxu0 0
        %428 = vmatmul.mubr.bf16.gmra.mxu0 %v325
        %v429 = vpop.f32.mrf.mxu0
        %v430 = vadd.f32 %v385, %v429
        %v431 = vpop.f32.mrf.mxu0
        %v432 = vpop.f32.mrf.mxu0
        %v433 = vadd.f32 %v385, %v432
        %v434 = vpop.f32.mrf.mxu0
        %435 = vmatprep.mubr.bf16.mxu0 0
        %436 = vmatmul.mubr.bf16.gmra.mxu0 %v326
        %v437 = vpop.f32.mrf.mxu0
        %v438 = vadd.f32 %v385, %v437
        %v439 = vpop.f32.mrf.mxu0
        %v440 = vpop.f32.mrf.mxu0
        %v441 = vadd.f32 %v385, %v440
        %v442 = vpop.f32.mrf.mxu0
        %443 = vmatprep.mubr.bf16.mxu0 0
        %444 = vmatmul.mubr.bf16.gmra.mxu0 %v327
        %v445 = vpop.f32.mrf.mxu0
        %v446 = vadd.f32 %v385, %v445
        %v447 = vpop.f32.mrf.mxu0
        %v448 = vpop.f32.mrf.mxu0
        %v449 = vadd.f32 %v385, %v448
        %v450 = vpop.f32.mrf.mxu0
        %451 = vmatprep.mubr.bf16.mxu0 0
        %452 = vmatmul.mubr.bf16.gmra.mxu0 %v328
        %v453 = vpop.f32.mrf.mxu0
        %v454 = vadd.f32 %v385, %v453
        %v455 = vpop.f32.mrf.mxu0
        %v456 = vpop.f32.mrf.mxu0
        %v457 = vadd.f32 %v385, %v456
        %v458 = vpop.f32.mrf.mxu0
        %459 = vmatprep.mubr.bf16.mxu0 0
        %460 = vmatmul.mubr.bf16.gmra.mxu0 %v329
        %v461 = vpop.f32.mrf.mxu0
        %v462 = vadd.f32 %v385, %v461
        %v463 = vpop.f32.mrf.mxu0
        %v464 = vpop.f32.mrf.mxu0
        %v465 = vadd.f32 %v385, %v464
        %v466 = vpop.f32.mrf.mxu0
        %467 = vmatprep.mubr.bf16.mxu0 0
        %468 = vmatmul.mubr.bf16.gmra.mxu0 %v330
        %v469 = vpop.f32.mrf.mxu0
        %v470 = vadd.f32 %v385, %v469
        %v471 = vpop.f32.mrf.mxu0
        %v472 = vpop.f32.mrf.mxu0
        %v473 = vadd.f32 %v385, %v472
        %v474 = vpop.f32.mrf.mxu0
        %475 = vmatprep.mubr.bf16.mxu0 0
        %476 = vmatmul.mubr.bf16.gmra.mxu0 %v331
        %v477 = vpop.f32.mrf.mxu0
        %v478 = vadd.f32 %v385, %v477
        %v479 = vpop.f32.mrf.mxu0
        %v480 = vpop.f32.mrf.mxu0
        %v481 = vadd.f32 %v385, %v480
        %v482 = vpop.f32.mrf.mxu0
        %483 = vmatprep.mubr.bf16.mxu0 0
        %484 = vmatmul.mubr.bf16.gmra.mxu0 %v332
        %v485 = vpop.f32.mrf.mxu0
        %v486 = vadd.f32 %v385, %v485
        %v487 = vpop.f32.mrf.mxu0
        %v488 = vpop.f32.mrf.mxu0
        %v489 = vadd.f32 %v385, %v488
        %v490 = vpop.f32.mrf.mxu0
        %491 = vmatprep.mubr.bf16.mxu0 0
        %492 = vmatmul.mubr.bf16.gmra.mxu0 %v333
        %v493 = vpop.f32.mrf.mxu0
        %v494 = vadd.f32 %v385, %v493
        %v495 = vpop.f32.mrf.mxu0
        %v496 = vpop.f32.mrf.mxu0
        %v497 = vadd.f32 %v385, %v496
        %v498 = vpop.f32.mrf.mxu0
        %499 = vmatprep.mubr.bf16.mxu0 0
        %500 = vmatmul.mubr.bf16.gmra.mxu0 %v334
        %v501 = vpop.f32.mrf.mxu0
        %v502 = vadd.f32 %v385, %v501
        %v503 = vpop.f32.mrf.mxu0
        %v504 = vpop.f32.mrf.mxu0
        %v505 = vadd.f32 %v385, %v504
        %v506 = vpop.f32.mrf.mxu0
        %507 = vmatprep.mubr.bf16.mxu0 0
        %508 = vmatmul.mubr.bf16.gmra.mxu0 %v335
        %v509 = vpop.f32.mrf.mxu0
        %v510 = vadd.f32 %v385, %v509
        %v511 = vpop.f32.mrf.mxu0
        %v512 = vpop.f32.mrf.mxu0
        %v513 = vadd.f32 %v385, %v512
        %v514 = vpop.f32.mrf.mxu0
        %515 = vmatprep.mubr.bf16.mxu0 0
        %516 = vmatmul.mubr.bf16.gmra.mxu0 %v336
        %v517 = vpop.f32.mrf.mxu0
        %v518 = vadd.f32 %v385, %v517
        %v519 = vpop.f32.mrf.mxu0
        %v520 = vpop.f32.mrf.mxu0
        %v521 = vadd.f32 %v385, %v520
        %v522 = vpop.f32.mrf.mxu0
        %523 = vmatprep.mubr.bf16.mxu0 0
        %524 = vmatmul.mubr.bf16.gmra.mxu0 %v337
        %v525 = vpop.f32.mrf.mxu0
        %v526 = vadd.f32 %v385, %v525
        %v527 = vpop.f32.mrf.mxu0
        %v528 = vpop.f32.mrf.mxu0
        %v529 = vadd.f32 %v385, %v528
        %v530 = vpop.f32.mrf.mxu0
        %531 = vmatprep.mubr.bf16.mxu0 0
        %532 = vmatmul.mubr.bf16.gmra.mxu0 %v338
        %v533 = vpop.f32.mrf.mxu0
        %v534 = vadd.f32 %v385, %v533
        %v535 = vpop.f32.mrf.mxu0
        %v536 = vpop.f32.mrf.mxu0
        %v537 = vadd.f32 %v385, %v536
        %v538 = vpop.f32.mrf.mxu0
        %539 = vmatprep.mubr.bf16.mxu0 0
        %540 = vmatmul.mubr.bf16.gmra.mxu0 %v339
        %v541 = vpop.f32.mrf.mxu0
        %v542 = vadd.f32 %v385, %v541
        %v543 = vpop.f32.mrf.mxu0
        %v544 = vpop.f32.mrf.mxu0
        %v545 = vadd.f32 %v385, %v544
        %v546 = vpop.f32.mrf.mxu0
        %547 = vmatprep.mubr.bf16.mxu0 0
        %548 = vmatmul.mubr.bf16.gmra.mxu0 %v340
        %v549 = vpop.f32.mrf.mxu0
        %v550 = vadd.f32 %v385, %v549
        %v551 = vpop.f32.mrf.mxu0
        %v552 = vpop.f32.mrf.mxu0
        %v553 = vadd.f32 %v385, %v552
        %v554 = vpop.f32.mrf.mxu0
        %555 = vmatprep.mubr.bf16.mxu0 0
        %556 = vmatmul.mubr.bf16.gmra.mxu0 %v341
        %v557 = vpop.f32.mrf.mxu0
        %v558 = vadd.f32 %v385, %v557
        %v559 = vpop.f32.mrf.mxu0
        %v560 = vpop.f32.mrf.mxu0
        %v561 = vadd.f32 %v385, %v560
        %v562 = vpop.f32.mrf.mxu0
        %563 = vmatprep.mubr.bf16.mxu0 0
        %564 = vmatmul.mubr.bf16.gmra.mxu0 %v342
        %v565 = vpop.f32.mrf.mxu0
        %v566 = vadd.f32 %v385, %v565
        %v567 = vpop.f32.mrf.mxu0
        %v568 = vpop.f32.mrf.mxu0
        %v569 = vadd.f32 %v385, %v568
        %v570 = vpop.f32.mrf.mxu0
        %571 = vmatprep.mubr.bf16.mxu0 0
        %572 = vmatmul.mubr.bf16.gmra.mxu0 %v343
        %v573 = vpop.f32.mrf.mxu0
        %v574 = vadd.f32 %v385, %v573
        %v575 = vpop.f32.mrf.mxu0
        %v576 = vpop.f32.mrf.mxu0
        %v577 = vadd.f32 %v385, %v576
        %v578 = vpop.f32.mrf.mxu0
        %579 = vmatprep.mubr.bf16.mxu0 0
        %580 = vmatmul.mubr.bf16.gmra.mxu0 %v344
        %v581 = vpop.f32.mrf.mxu0
        %v582 = vadd.f32 %v385, %v581
        %v583 = vpop.f32.mrf.mxu0
        %v584 = vpop.f32.mrf.mxu0
        %v585 = vadd.f32 %v385, %v584
        %v586 = vpop.f32.mrf.mxu0
        %587 = vmatprep.mubr.bf16.mxu0 0
        %588 = vmatmul.mubr.bf16.gmra.mxu0 %v345
        %v589 = vpop.f32.mrf.mxu0
        %v590 = vadd.f32 %v385, %v589
        %v591 = vpop.f32.mrf.mxu0
        %v592 = vpop.f32.mrf.mxu0
        %v593 = vadd.f32 %v385, %v592
        %v594 = vpop.f32.mrf.mxu0
        %595 = vmatprep.mubr.bf16.mxu0 0
        %596 = vmatmul.mubr.bf16.gmra.mxu0 %v346
        %v597 = vpop.f32.mrf.mxu0
        %v598 = vadd.f32 %v385, %v597
        %v599 = vpop.f32.mrf.mxu0
        %v600 = vpop.f32.mrf.mxu0
        %v601 = vadd.f32 %v385, %v600
        %v602 = vpop.f32.mrf.mxu0
        %603 = vmatprep.mubr.bf16.mxu0 0
        %604 = vmatmul.mubr.bf16.gmra.mxu0 %v347
        %v605 = vpop.f32.mrf.mxu0
        %v606 = vadd.f32 %v385, %v605
        %v607 = vpop.f32.mrf.mxu0
        %v608 = vpop.f32.mrf.mxu0
        %v609 = vadd.f32 %v385, %v608
        %v610 = vpop.f32.mrf.mxu0
        %611 = vmatprep.mubr.bf16.mxu0 0
        %612 = vmatmul.mubr.bf16.gmra.mxu0 %v348
        %v613 = vpop.f32.mrf.mxu0
        %v614 = vadd.f32 %v385, %v613
        %v615 = vpop.f32.mrf.mxu0
        %v616 = vpop.f32.mrf.mxu0
        %v617 = vadd.f32 %v385, %v616
        %v618 = vpop.f32.mrf.mxu0
        %619 = vmatprep.mubr.bf16.mxu0 0
        %620 = vmatmul.mubr.bf16.gmra.mxu0 %v349
        %v621 = vpop.f32.mrf.mxu0
        %v622 = vadd.f32 %v385, %v621
        %v623 = vpop.f32.mrf.mxu0
        %v624 = vpop.f32.mrf.mxu0
        %v625 = vadd.f32 %v385, %v624
        %v626 = vpop.f32.mrf.mxu0
        %627 = vmatprep.mubr.bf16.mxu0 0
        %628 = vmatmul.mubr.bf16.gmra.mxu0 %v350
        %v629 = vpop.f32.mrf.mxu0
        %v630 = vadd.f32 %v385, %v629
        %v631 = vpop.f32.mrf.mxu0
        %v632 = vpop.f32.mrf.mxu0
        %v633 = vadd.f32 %v385, %v632
        %v634 = vpop.f32.mrf.mxu0
        %635 = vmatprep.mubr.bf16.mxu0 0
        %636 = vmatmul.mubr.bf16.gmra.mxu0 %v351
        %v637 = vpop.f32.mrf.mxu0
        %v638 = vadd.f32 %v385, %v637
        %v639 = vpop.f32.mrf.mxu0
        %v640 = vpop.f32.mrf.mxu0
        %v641 = vadd.f32 %v385, %v640
        %v642 = vpop.f32.mrf.mxu0
        %643 = vmatprep.mubr.bf16.mxu0 0
        %644 = vmatmul.mubr.bf16.gmra.mxu0 %v352
        %v645 = vpop.f32.mrf.mxu0
        %v646 = vadd.f32 %v385, %v645
        %v647 = vpop.f32.mrf.mxu0
        %v648 = vpop.f32.mrf.mxu0
        %v649 = vadd.f32 %v385, %v648
        %v650 = vpop.f32.mrf.mxu0
        %651 = vmatprep.mubr.bf16.mxu0 0
        %652 = vmatmul.mubr.bf16.gmra.mxu0 %v353
        %v653 = vpop.f32.mrf.mxu0
        %v654 = vadd.f32 %v385, %v653
        %v655 = vpop.f32.mrf.mxu0
        %v656 = vpop.f32.mrf.mxu0
        %v657 = vadd.f32 %v385, %v656
        %v658 = vpop.f32.mrf.mxu0
        %659 = vmatprep.mubr.bf16.mxu0 0
        %660 = vmatmul.mubr.bf16.gmra.mxu0 %v354
        %v661 = vpop.f32.mrf.mxu0
        %v662 = vadd.f32 %v385, %v661
        %v663 = vpop.f32.mrf.mxu0
        %v664 = vpop.f32.mrf.mxu0
        %v665 = vadd.f32 %v385, %v664
        %v666 = vpop.f32.mrf.mxu0
        %667 = vmatprep.mubr.bf16.mxu0 0
        %668 = vmatmul.mubr.bf16.gmra.mxu0 %v355
        %v669 = vpop.f32.mrf.mxu0
        %v670 = vadd.f32 %v385, %v669
        %v671 = vpop.f32.mrf.mxu0
        %v672 = vpop.f32.mrf.mxu0
        %v673 = vadd.f32 %v385, %v672
        %v674 = vpop.f32.mrf.mxu0
        %675 = vdwg.mxu0
        %v676 = vmax.f32 %v422, 0.0
        %v677 = vmax.f32 %v425, 0.0
        %v678 = vmax.f32 %v430, 0.0
        %v679 = vmax.f32 %v433, 0.0
        %v680 = vmax.f32 %v438, 0.0
        %v681 = vmax.f32 %v441, 0.0
        %v682 = vmax.f32 %v446, 0.0
        %v683 = vmax.f32 %v449, 0.0
        %v684 = vmax.f32 %v454, 0.0
        %v685 = vmax.f32 %v457, 0.0
        %v686 = vmax.f32 %v462, 0.0
        %v687 = vmax.f32 %v465, 0.0
        %v688 = vmax.f32 %v470, 0.0
        %v689 = vmax.f32 %v473, 0.0
        %v690 = vmax.f32 %v478, 0.0
        %v691 = vmax.f32 %v481, 0.0
        %v692 = vmax.f32 %v486, 0.0
        %v693 = vmax.f32 %v489, 0.0
        %v694 = vmax.f32 %v494, 0.0
        %v695 = vmax.f32 %v497, 0.0
        %v696 = vmax.f32 %v502, 0.0
        %v697 = vmax.f32 %v505, 0.0
        %v698 = vmax.f32 %v510, 0.0
        %v699 = vmax.f32 %v513, 0.0
        %v700 = vmax.f32 %v518, 0.0
        %v701 = vmax.f32 %v521, 0.0
        %v702 = vmax.f32 %v526, 0.0
        %v703 = vmax.f32 %v529, 0.0
        %v704 = vmax.f32 %v534, 0.0
        %v705 = vmax.f32 %v537, 0.0
        %v706 = vmax.f32 %v542, 0.0
        %v707 = vmax.f32 %v545, 0.0
        %v708 = vmax.f32 %v550, 0.0
        %v709 = vmax.f32 %v553, 0.0
        %v710 = vmax.f32 %v558, 0.0
        %v711 = vmax.f32 %v561, 0.0
        %v712 = vmax.f32 %v566, 0.0
        %v713 = vmax.f32 %v569, 0.0
        %v714 = vmax.f32 %v574, 0.0
        %v715 = vmax.f32 %v577, 0.0
        %v716 = vmax.f32 %v582, 0.0
        %v717 = vmax.f32 %v585, 0.0
        %v718 = vmax.f32 %v590, 0.0
        %v719 = vmax.f32 %v593, 0.0
        %v720 = vmax.f32 %v598, 0.0
        %v721 = vmax.f32 %v601, 0.0
        %v722 = vmax.f32 %v606, 0.0
        %v723 = vmax.f32 %v609, 0.0
        %v724 = vmax.f32 %v614, 0.0
        %v725 = vmax.f32 %v617, 0.0
        %v726 = vmax.f32 %v622, 0.0
        %v727 = vmax.f32 %v625, 0.0
        %v728 = vmax.f32 %v630, 0.0
        %v729 = vmax.f32 %v633, 0.0
        %v730 = vmax.f32 %v638, 0.0
        %v731 = vmax.f32 %v641, 0.0
        %v732 = vmax.f32 %v646, 0.0
        %v733 = vmax.f32 %v649, 0.0
        %v734 = vmax.f32 %v654, 0.0
        %v735 = vmax.f32 %v657, 0.0
        %v736 = vmax.f32 %v662, 0.0
        %v737 = vmax.f32 %v665, 0.0
        %v738 = vmax.f32 %v670, 0.0
        %v739 = vmax.f32 %v673, 0.0
        %740 = vst [vmem:[%s243] sm:$0xff] %v676
        %741 = vst [vmem:[%s243 + $0x8] sm:$0xff] %v677
        %742 = vst [vmem:[%s243 + $0x10] sm:$0xff] %v678
        %743 = vst [vmem:[%s243 + $0x18] sm:$0xff] %v679
        %744 = vst [vmem:[%s243 + $0x20] sm:$0xff] %v680
        %745 = vst [vmem:[%s243 + $0x28] sm:$0xff] %v681
        %746 = vst [vmem:[%s243 + $0x30] sm:$0xff] %v682
        %747 = vst [vmem:[%s243 + $0x38] sm:$0xff] %v683
        %748 = vst [vmem:[%s243 + $0x40] sm:$0xff] %v684
        %749 = vst [vmem:[%s243 + $0x48] sm:$0xff] %v685
        %750 = vst [vmem:[%s243 + $0x50] sm:$0xff] %v686
        %751 = vst [vmem:[%s243 + $0x58] sm:$0xff] %v687
        %752 = vst [vmem:[%s243 + $0x60] sm:$0xff] %v688
        %753 = vst [vmem:[%s243 + $0x68] sm:$0xff] %v689
        %754 = vst [vmem:[%s243 + $0x70] sm:$0xff] %v690
        %755 = vst [vmem:[%s243 + $0x78] sm:$0xff] %v691
        %756 = vst [vmem:[%s243 + $0x80] sm:$0xff] %v692
        %757 = vst [vmem:[%s243 + $0x88] sm:$0xff] %v693
        %758 = vst [vmem:[%s243 + $0x90] sm:$0xff] %v694
        %759 = vst [vmem:[%s243 + $0x98] sm:$0xff] %v695
        %760 = vst [vmem:[%s243 + $0xa0] sm:$0xff] %v696
        %761 = vst [vmem:[%s243 + $0xa8] sm:$0xff] %v697
        %762 = vst [vmem:[%s243 + $0xb0] sm:$0xff] %v698
        %763 = vst [vmem:[%s243 + $0xb8] sm:$0xff] %v699
        %764 = vst [vmem:[%s243 + $0xc0] sm:$0xff] %v700
        %765 = vst [vmem:[%s243 + $0xc8] sm:$0xff] %v701
        %766 = vst [vmem:[%s243 + $0xd0] sm:$0xff] %v702
        %767 = vst [vmem:[%s243 + $0xd8] sm:$0xff] %v703
        %768 = vst [vmem:[%s243 + $0xe0] sm:$0xff] %v704
        %769 = vst [vmem:[%s243 + $0xe8] sm:$0xff] %v705
        %770 = vst [vmem:[%s243 + $0xf0] sm:$0xff] %v706
        %771 = vst [vmem:[%s243 + $0xf8] sm:$0xff] %v707
        %772 = vst [vmem:[%s243 + $0x100] sm:$0xff] %v708
        %773 = vst [vmem:[%s243 + $0x108] sm:$0xff] %v709
        %774 = vst [vmem:[%s243 + $0x110] sm:$0xff] %v710
        %775 = vst [vmem:[%s243 + $0x118] sm:$0xff] %v711
        %776 = vst [vmem:[%s243 + $0x120] sm:$0xff] %v712
        %777 = vst [vmem:[%s243 + $0x128] sm:$0xff] %v713
        %778 = vst [vmem:[%s243 + $0x130] sm:$0xff] %v714
        %779 = vst [vmem:[%s243 + $0x138] sm:$0xff] %v715
        %780 = vst [vmem:[%s243 + $0x140] sm:$0xff] %v716
        %781 = vst [vmem:[%s243 + $0x148] sm:$0xff] %v717
        %782 = vst [vmem:[%s243 + $0x150] sm:$0xff] %v718
        %783 = vst [vmem:[%s243 + $0x158] sm:$0xff] %v719
        %784 = vst [vmem:[%s243 + $0x160] sm:$0xff] %v720
        %785 = vst [vmem:[%s243 + $0x168] sm:$0xff] %v721
        %786 = vst [vmem:[%s243 + $0x170] sm:$0xff] %v722
        %787 = vst [vmem:[%s243 + $0x178] sm:$0xff] %v723
        %788 = vst [vmem:[%s243 + $0x180] sm:$0xff] %v724
        %789 = vst [vmem:[%s243 + $0x188] sm:$0xff] %v725
        %790 = vst [vmem:[%s243 + $0x190] sm:$0xff] %v726
        %791 = vst [vmem:[%s243 + $0x198] sm:$0xff] %v727
        %792 = vst [vmem:[%s243 + $0x1a0] sm:$0xff] %v728
        %793 = vst [vmem:[%s243 + $0x1a8] sm:$0xff] %v729
        %794 = vst [vmem:[%s243 + $0x1b0] sm:$0xff] %v730
        %795 = vst [vmem:[%s243 + $0x1b8] sm:$0xff] %v731
        %796 = vst [vmem:[%s243 + $0x1c0] sm:$0xff] %v732
        %797 = vst [vmem:[%s243 + $0x1c8] sm:$0xff] %v733
        %798 = vst [vmem:[%s243 + $0x1d0] sm:$0xff] %v734
        %799 = vst [vmem:[%s243 + $0x1d8] sm:$0xff] %v735
        %800 = vst [vmem:[%s243 + $0x1e0] sm:$0xff] %v736
        %801 = vst [vmem:[%s243 + $0x1e8] sm:$0xff] %v737
        %802 = vst [vmem:[%s243 + $0x1f0] sm:$0xff] %v738
        %803 = vst [vmem:[%s243 + $0x1f8] sm:$0xff] %v739
        %v804 = vmul.f32 %v676, %v676
        %v805 = vmul.f32 %v677, %v677
        %v806 = vmul.f32 %v678, %v678
        %v807 = vmul.f32 %v679, %v679
        %v808 = vmul.f32 %v680, %v680
        %v809 = vmul.f32 %v681, %v681
        %v810 = vmul.f32 %v682, %v682
        %v811 = vmul.f32 %v683, %v683
        %v812 = vmul.f32 %v684, %v684
        %v813 = vmul.f32 %v685, %v685
        %v814 = vmul.f32 %v686, %v686
        %v815 = vmul.f32 %v687, %v687
        %v816 = vmul.f32 %v688, %v688
        %v817 = vmul.f32 %v689, %v689
        %v818 = vmul.f32 %v690, %v690
        %v819 = vmul.f32 %v691, %v691
        %v820 = vmul.f32 %v692, %v692
        %v821 = vmul.f32 %v693, %v693
        %v822 = vmul.f32 %v694, %v694
        %v823 = vmul.f32 %v695, %v695
        %v824 = vmul.f32 %v696, %v696
        %v825 = vmul.f32 %v697, %v697
        %v826 = vmul.f32 %v698, %v698
        %v827 = vmul.f32 %v699, %v699
        %v828 = vmul.f32 %v700, %v700
        %v829 = vmul.f32 %v701, %v701
        %v830 = vmul.f32 %v702, %v702
        %v831 = vmul.f32 %v703, %v703
        %v832 = vmul.f32 %v704, %v704
        %v833 = vmul.f32 %v705, %v705
        %v834 = vmul.f32 %v706, %v706
        %v835 = vmul.f32 %v707, %v707
        %v836 = vmul.f32 %v708, %v708
        %v837 = vmul.f32 %v709, %v709
        %v838 = vmul.f32 %v710, %v710
        %v839 = vmul.f32 %v711, %v711
        %v840 = vmul.f32 %v712, %v712
        %v841 = vmul.f32 %v713, %v713
        %v842 = vmul.f32 %v714, %v714
        %v843 = vmul.f32 %v715, %v715
        %v844 = vmul.f32 %v716, %v716
        %v845 = vmul.f32 %v717, %v717
        %v846 = vmul.f32 %v718, %v718
        %v847 = vmul.f32 %v719, %v719
        %v848 = vmul.f32 %v720, %v720
        %v849 = vmul.f32 %v721, %v721
        %v850 = vmul.f32 %v722, %v722
        %v851 = vmul.f32 %v723, %v723
        %v852 = vmul.f32 %v724, %v724
        %v853 = vmul.f32 %v725, %v725
        %v854 = vmul.f32 %v726, %v726
        %v855 = vmul.f32 %v727, %v727
        %v856 = vmul.f32 %v728, %v728
        %v857 = vmul.f32 %v729, %v729
        %v858 = vmul.f32 %v730, %v730
        %v859 = vmul.f32 %v731, %v731
        %v860 = vmul.f32 %v732, %v732
        %v861 = vmul.f32 %v733, %v733
        %v862 = vmul.f32 %v734, %v734
        %v863 = vmul.f32 %v735, %v735
        %v864 = vmul.f32 %v736, %v736
        %v865 = vmul.f32 %v737, %v737
        %v866 = vmul.f32 %v738, %v738
        %v867 = vmul.f32 %v739, %v739
        %868 = vadd.xlane.f32.xlu0 %v804
        %v869 = vpop.xlane.xlu0 %868
        %870 = vadd.xlane.f32.xlu0 %v805
        %v871 = vpop.xlane.xlu0 %870
        %872 = vadd.xlane.f32.xlu0 %v806
        %v873 = vpop.xlane.xlu0 %872
        %874 = vadd.xlane.f32.xlu0 %v807
        %v875 = vpop.xlane.xlu0 %874
        %876 = vadd.xlane.f32.xlu0 %v808
        %v877 = vpop.xlane.xlu0 %876
        %878 = vadd.xlane.f32.xlu0 %v809
        %v879 = vpop.xlane.xlu0 %878
        %880 = vadd.xlane.f32.xlu0 %v810
        %v881 = vpop.xlane.xlu0 %880
        %882 = vadd.xlane.f32.xlu0 %v811
        %v883 = vpop.xlane.xlu0 %882
        %884 = vadd.xlane.f32.xlu0 %v812
        %v885 = vpop.xlane.xlu0 %884
        %886 = vadd.xlane.f32.xlu0 %v813
        %v887 = vpop.xlane.xlu0 %886
        %888 = vadd.xlane.f32.xlu0 %v814
        %v889 = vpop.xlane.xlu0 %888
        %890 = vadd.xlane.f32.xlu0 %v815
        %v891 = vpop.xlane.xlu0 %890
        %892 = vadd.xlane.f32.xlu0 %v816
        %v893 = vpop.xlane.xlu0 %892
        %894 = vadd.xlane.f32.xlu0 %v817
        %v895 = vpop.xlane.xlu0 %894
        %896 = vadd.xlane.f32.xlu0 %v818
        %v897 = vpop.xlane.xlu0 %896
        %898 = vadd.xlane.f32.xlu0 %v819
        %v899 = vpop.xlane.xlu0 %898
        %900 = vadd.xlane.f32.xlu0 %v820
        %v901 = vpop.xlane.xlu0 %900
        %902 = vadd.xlane.f32.xlu0 %v821
        %v903 = vpop.xlane.xlu0 %902
        %904 = vadd.xlane.f32.xlu0 %v822
        %v905 = vpop.xlane.xlu0 %904
        %906 = vadd.xlane.f32.xlu0 %v823
        %v907 = vpop.xlane.xlu0 %906
        %908 = vadd.xlane.f32.xlu0 %v824
        %v909 = vpop.xlane.xlu0 %908
        %910 = vadd.xlane.f32.xlu0 %v825
        %v911 = vpop.xlane.xlu0 %910
        %912 = vadd.xlane.f32.xlu0 %v826
        %v913 = vpop.xlane.xlu0 %912
        %914 = vadd.xlane.f32.xlu0 %v827
        %v915 = vpop.xlane.xlu0 %914
        %916 = vadd.xlane.f32.xlu0 %v828
        %v917 = vpop.xlane.xlu0 %916
        %918 = vadd.xlane.f32.xlu0 %v829
        %v919 = vpop.xlane.xlu0 %918
        %920 = vadd.xlane.f32.xlu0 %v830
        %v921 = vpop.xlane.xlu0 %920
        %922 = vadd.xlane.f32.xlu0 %v831
        %v923 = vpop.xlane.xlu0 %922
        %924 = vadd.xlane.f32.xlu0 %v832
        %v925 = vpop.xlane.xlu0 %924
        %926 = vadd.xlane.f32.xlu0 %v833
        %v927 = vpop.xlane.xlu0 %926
        %928 = vadd.xlane.f32.xlu0 %v834
        %v929 = vpop.xlane.xlu0 %928
        %930 = vadd.xlane.f32.xlu0 %v835
        %v931 = vpop.xlane.xlu0 %930
        %932 = vadd.xlane.f32.xlu0 %v836
        %v933 = vpop.xlane.xlu0 %932
        %934 = vadd.xlane.f32.xlu0 %v837
        %v935 = vpop.xlane.xlu0 %934
        %936 = vadd.xlane.f32.xlu0 %v838
        %v937 = vpop.xlane.xlu0 %936
        %938 = vadd.xlane.f32.xlu0 %v839
        %v939 = vpop.xlane.xlu0 %938
        %940 = vadd.xlane.f32.xlu0 %v840
        %v941 = vpop.xlane.xlu0 %940
        %942 = vadd.xlane.f32.xlu0 %v841
        %v943 = vpop.xlane.xlu0 %942
        %944 = vadd.xlane.f32.xlu0 %v842
        %v945 = vpop.xlane.xlu0 %944
        %946 = vadd.xlane.f32.xlu0 %v843
        %v947 = vpop.xlane.xlu0 %946
        %948 = vadd.xlane.f32.xlu0 %v844
        %v949 = vpop.xlane.xlu0 %948
        %950 = vadd.xlane.f32.xlu0 %v845
        %v951 = vpop.xlane.xlu0 %950
        %952 = vadd.xlane.f32.xlu0 %v846
        %v953 = vpop.xlane.xlu0 %952
        %954 = vadd.xlane.f32.xlu0 %v847
        %v955 = vpop.xlane.xlu0 %954
        %956 = vadd.xlane.f32.xlu0 %v848
        %v957 = vpop.xlane.xlu0 %956
        %958 = vadd.xlane.f32.xlu0 %v849
        %v959 = vpop.xlane.xlu0 %958
        %960 = vadd.xlane.f32.xlu0 %v850
        %v961 = vpop.xlane.xlu0 %960
        %962 = vadd.xlane.f32.xlu0 %v851
        %v963 = vpop.xlane.xlu0 %962
        %964 = vadd.xlane.f32.xlu0 %v852
        %v965 = vpop.xlane.xlu0 %964
        %966 = vadd.xlane.f32.xlu0 %v853
        %v967 = vpop.xlane.xlu0 %966
        %968 = vadd.xlane.f32.xlu0 %v854
        %v969 = vpop.xlane.xlu0 %968
        %970 = vadd.xlane.f32.xlu0 %v855
        %v971 = vpop.xlane.xlu0 %970
        %972 = vadd.xlane.f32.xlu0 %v856
        %v973 = vpop.xlane.xlu0 %972
        %974 = vadd.xlane.f32.xlu0 %v857
        %v975 = vpop.xlane.xlu0 %974
        %976 = vadd.xlane.f32.xlu0 %v858
        %v977 = vpop.xlane.xlu0 %976
        %978 = vadd.xlane.f32.xlu0 %v859
        %v979 = vpop.xlane.xlu0 %978
        %980 = vadd.xlane.f32.xlu0 %v860
        %v981 = vpop.xlane.xlu0 %980
        %982 = vadd.xlane.f32.xlu0 %v861
        %v983 = vpop.xlane.xlu0 %982
        %984 = vadd.xlane.f32.xlu0 %v862
        %v985 = vpop.xlane.xlu0 %984
        %986 = vadd.xlane.f32.xlu0 %v863
        %v987 = vpop.xlane.xlu0 %986
        %988 = vadd.xlane.f32.xlu0 %v864
        %v989 = vpop.xlane.xlu0 %988
        %990 = vadd.xlane.f32.xlu0 %v865
        %v991 = vpop.xlane.xlu0 %990
        %992 = vadd.xlane.f32.xlu0 %v866
        %v993 = vpop.xlane.xlu0 %992
        %994 = vadd.xlane.f32.xlu0 %v867
        %v995 = vpop.xlane.xlu0 %994
        %vm996 = vcmask 7168
        %997 = vst.msk [vmem:[%s257] sm:$0xff] %vm996, %v869
        %998 = vst.msk [vmem:[%s257 + $0x8] sm:$0xff] %vm996, %v871
        %999 = vst.msk [vmem:[%s257 + $0x10] sm:$0xff] %vm996, %v873
        %1000 = vst.msk [vmem:[%s257 + $0x18] sm:$0xff] %vm996, %v875
        %1001 = vst.msk [vmem:[%s257 + $0x20] sm:$0xff] %vm996, %v877
        %1002 = vst.msk [vmem:[%s257 + $0x28] sm:$0xff] %vm996, %v879
        %1003 = vst.msk [vmem:[%s257 + $0x30] sm:$0xff] %vm996, %v881
        %1004 = vst.msk [vmem:[%s257 + $0x38] sm:$0xff] %vm996, %v883
        %1005 = vst.msk [vmem:[%s257 + $0x40] sm:$0xff] %vm996, %v885
        %1006 = vst.msk [vmem:[%s257 + $0x48] sm:$0xff] %vm996, %v887
        %1007 = vst.msk [vmem:[%s257 + $0x50] sm:$0xff] %vm996, %v889
        %1008 = vst.msk [vmem:[%s257 + $0x58] sm:$0xff] %vm996, %v891
        %1009 = vst.msk [vmem:[%s257 + $0x60] sm:$0xff] %vm996, %v893
        %1010 = vst.msk [vmem:[%s257 + $0x68] sm:$0xff] %vm996, %v895
        %1011 = vst.msk [vmem:[%s257 + $0x70] sm:$0xff] %vm996, %v897
        %1012 = vst.msk [vmem:[%s257 + $0x78] sm:$0xff] %vm996, %v899
        %1013 = vst.msk [vmem:[%s257 + $0x80] sm:$0xff] %vm996, %v901
        %1014 = vst.msk [vmem:[%s257 + $0x88] sm:$0xff] %vm996, %v903
        %1015 = vst.msk [vmem:[%s257 + $0x90] sm:$0xff] %vm996, %v905
        %1016 = vst.msk [vmem:[%s257 + $0x98] sm:$0xff] %vm996, %v907
        %1017 = vst.msk [vmem:[%s257 + $0xa0] sm:$0xff] %vm996, %v909
        %1018 = vst.msk [vmem:[%s257 + $0xa8] sm:$0xff] %vm996, %v911
        %1019 = vst.msk [vmem:[%s257 + $0xb0] sm:$0xff] %vm996, %v913
        %1020 = vst.msk [vmem:[%s257 + $0xb8] sm:$0xff] %vm996, %v915
        %1021 = vst.msk [vmem:[%s257 + $0xc0] sm:$0xff] %vm996, %v917
        %1022 = vst.msk [vmem:[%s257 + $0xc8] sm:$0xff] %vm996, %v919
        %1023 = vst.msk [vmem:[%s257 + $0xd0] sm:$0xff] %vm996, %v921
        %1024 = vst.msk [vmem:[%s257 + $0xd8] sm:$0xff] %vm996, %v923
        %1025 = vst.msk [vmem:[%s257 + $0xe0] sm:$0xff] %vm996, %v925
        %1026 = vst.msk [vmem:[%s257 + $0xe8] sm:$0xff] %vm996, %v927
        %1027 = vst.msk [vmem:[%s257 + $0xf0] sm:$0xff] %vm996, %v929
        %1028 = vst.msk [vmem:[%s257 + $0xf8] sm:$0xff] %vm996, %v931
        %1029 = vst.msk [vmem:[%s257 + $0x100] sm:$0xff] %vm996, %v933
        %1030 = vst.msk [vmem:[%s257 + $0x108] sm:$0xff] %vm996, %v935
        %1031 = vst.msk [vmem:[%s257 + $0x110] sm:$0xff] %vm996, %v937
        %1032 = vst.msk [vmem:[%s257 + $0x118] sm:$0xff] %vm996, %v939
        %1033 = vst.msk [vmem:[%s257 + $0x120] sm:$0xff] %vm996, %v941
        %1034 = vst.msk [vmem:[%s257 + $0x128] sm:$0xff] %vm996, %v943
        %1035 = vst.msk [vmem:[%s257 + $0x130] sm:$0xff] %vm996, %v945
        %1036 = vst.msk [vmem:[%s257 + $0x138] sm:$0xff] %vm996, %v947
        %1037 = vst.msk [vmem:[%s257 + $0x140] sm:$0xff] %vm996, %v949
        %1038 = vst.msk [vmem:[%s257 + $0x148] sm:$0xff] %vm996, %v951
        %1039 = vst.msk [vmem:[%s257 + $0x150] sm:$0xff] %vm996, %v953
        %1040 = vst.msk [vmem:[%s257 + $0x158] sm:$0xff] %vm996, %v955
        %1041 = vst.msk [vmem:[%s257 + $0x160] sm:$0xff] %vm996, %v957
        %1042 = vst.msk [vmem:[%s257 + $0x168] sm:$0xff] %vm996, %v959
        %1043 = vst.msk [vmem:[%s257 + $0x170] sm:$0xff] %vm996, %v961
        %1044 = vst.msk [vmem:[%s257 + $0x178] sm:$0xff] %vm996, %v963
        %1045 = vst.msk [vmem:[%s257 + $0x180] sm:$0xff] %vm996, %v965
        %1046 = vst.msk [vmem:[%s257 + $0x188] sm:$0xff] %vm996, %v967
        %1047 = vst.msk [vmem:[%s257 + $0x190] sm:$0xff] %vm996, %v969
        %1048 = vst.msk [vmem:[%s257 + $0x198] sm:$0xff] %vm996, %v971
        %1049 = vst.msk [vmem:[%s257 + $0x1a0] sm:$0xff] %vm996, %v973
        %1050 = vst.msk [vmem:[%s257 + $0x1a8] sm:$0xff] %vm996, %v975
        %1051 = vst.msk [vmem:[%s257 + $0x1b0] sm:$0xff] %vm996, %v977
        %1052 = vst.msk [vmem:[%s257 + $0x1b8] sm:$0xff] %vm996, %v979
        %1053 = vst.msk [vmem:[%s257 + $0x1c0] sm:$0xff] %vm996, %v981
        %1054 = vst.msk [vmem:[%s257 + $0x1c8] sm:$0xff] %vm996, %v983
        %1055 = vst.msk [vmem:[%s257 + $0x1d0] sm:$0xff] %vm996, %v985
        %1056 = vst.msk [vmem:[%s257 + $0x1d8] sm:$0xff] %vm996, %v987
        %1057 = vst.msk [vmem:[%s257 + $0x1e0] sm:$0xff] %vm996, %v989
        %1058 = vst.msk [vmem:[%s257 + $0x1e8] sm:$0xff] %vm996, %v991
        %1059 = vst.msk [vmem:[%s257 + $0x1f0] sm:$0xff] %vm996, %v993
        %1060 = vst.msk [vmem:[%s257 + $0x1f8] sm:$0xff] %vm996, %v995
        %s1061 = sand.u32 %s99, 1
        %s1062 = scalar_lea.sflag [#allocation4], %s1061
        %s1063 = sand.u32 %s99, 1
        %s1064 = smul.addr %s1063, 512
        %s1065 = scalar_lea.vmem [#allocation8], %s1064
        %s1066 = smul.u32 64, %s23
        %p1067 = scmp.lt.s32.totalorder %s1066, 511
        %s1068 = scalar_select %p1067, %s1066, 511
        %s1069 = smul.addr %s1068, 8
        %s1070 = scalar_lea.vmem %s4, %s1069
        // Predicated region
        $region45: #{tpu_custom_call.1} parent=31 // pred_check
          %p1071 = pneg %p109
        $region46: #{tpu_custom_call.1} parent=31 // pred_check_branch
          %1073 = sbr.rel (%p1071) target = $region48
        $region47: #{tpu_custom_call.1} parent=31 // pred_region
          %s1074 = smul.u32 64, %s23
          %s1076 = ssub.s32 8192, 8192
          %1077 = vsyncadd %s1062, %s1076
          %s1078 = smul.addr %s1074, 128
          %s1079 = scalar_lea.hbm %s3, %s1078
          %s1080 = sshll.u32 %s1065, 4
          %s1081 = int_to_ptr.vmem [resolvable:$true] %s1080
          %1086 = dma.vmem_to_hbm [thread:$0]  %s1081, 8192, %s1079, %s1062, 128, 128, 8
        $region48: #{tpu_custom_call.1} parent=31 // pred_fallthru
          _
        // Predicated region
        $region49: #{tpu_custom_call.1} parent=31 // pred_check
          %p1087 = pneg %p135
        $region50: #{tpu_custom_call.1} parent=31 // pred_check_branch
          %1089 = sbr.rel (%p1087) target = $region52
        $region51: #{tpu_custom_call.1} parent=31 // pred_region
          %s1090 = smul.u32 64, %s23
        $region52: #{tpu_custom_call.1} parent=31 // pred_fallthru
          _
      $region32: #{tpu_custom_call.1} parent=5 // pred_fallthru
        _
      %p1091 = scmp.le.s32.totalorder 2, %s18
      // Predicated region
      $region53: #{tpu_custom_call.1} parent=5 // pred_check
        %p1092 = pneg %p1091
      $region54: #{tpu_custom_call.1} parent=5 // pred_check_branch
        %1094 = sbr.rel (%p1092) target = $region56
      $region55: #{tpu_custom_call.1} parent=5 // pred_region
        %s1095 = ssub.s32 %s18, 2
        // Predicated region
        $region57: #{tpu_custom_call.1} parent=55 // pred_check
          %p1096 = pneg %p115
        $region58: #{tpu_custom_call.1} parent=55 // pred_check_branch
          %1098 = sbr.rel (%p1096) target = $region60
        $region59: #{tpu_custom_call.1} parent=55 // pred_region
          %s1099 = sand.u32 %s100, 1
          %s1100 = scalar_lea.sflag [#allocation4], %s1099
          %s1101 = sand.u32 %s100, 1
          %s1102 = smul.addr %s1101, 512
          %s1103 = scalar_lea.vmem [#allocation8], %s1102
          %1104 = dma.done %s1100, 8192
        $region60: #{tpu_custom_call.1} parent=55 // pred_fallthru
          _
        // Predicated region
        $region61: #{tpu_custom_call.1} parent=55 // pred_check
          %p1105 = pneg %p141
        $region62: #{tpu_custom_call.1} parent=55 // pred_check_branch
          %1107 = sbr.rel (%p1105) target = $region64
        $region63: #{tpu_custom_call.1} parent=55 // pred_region
          %s1108 = smul.u32 64, %s24
          %p1109 = scmp.lt.s32.totalorder %s1108, 511
          %s1110 = scalar_select %p1109, %s1108, 511
          %s1111 = smul.addr %s1110, 8
          %s1112 = scalar_lea.vmem %s4, %s1111
        $region64: #{tpu_custom_call.1} parent=55 // pred_fallthru
          _
      $region56: #{tpu_custom_call.1} parent=5 // pred_fallthru
        _
    $region6: #{tpu_custom_call.1} parent=1 // loop_footer
      %s22 = sadd.s32 1, %s18
    $region7: #{tpu_custom_call.1} parent=1 // loop_footer_branch
      %17 = sbr.rel target = $region3
    $region8: #{tpu_custom_call.1} parent=1 // loop_exit
      _
    %1113 = vsyncpa [#allocation3], 1
    %s1114 = scalar_lea.sflag [#allocation3], 1
    %1115 = vsyncpa %s1114, 1
    %1116 = vsyncpa [#allocation6], 1
    %1117 = vsyncpa [#allocation4], 1
    %s1118 = scalar_lea.sflag [#allocation4], 1
    %1119 = vsyncpa %s1118, 1

</llo_original>
